<compile_context>
chip_gen: v7x
topology: tpu7x:2x2x1
jax: 0.10.0
libtpu: 0.0.40
codegen_flags: <defaults>
</compile_context>

<pallas_src>
import functools
import numpy as np
import jax
import jax.numpy as jnp
from jax import lax
from jax.experimental import pallas as pl
from jax.experimental.pallas import tpu as pltpu


def _round_up(x, m):
    return ((x + m - 1) // m) * m


def _model_wrapper_kernel(x_ref, wc_ref, bc_ref, gap_ref, wf_ref, bf_ref,
                          o_ref, patches_ref, *, H, W, C):
    """Fused preprocess + 3x3 SAME conv + ReLU + masked GAP + linear (one batch block).

    x_ref      : (Bt, C, FLAT)      f32  centered (x-mean), zero-padded, row-flattened image
    wc_ref     : (F, 9*C)           cdt  conv weight, columns in (kh,kw,c) order, 1/std folded
    bc_ref     : (F, 1)             f32  conv bias (column, broadcasts over lanes)
    gap_ref    : (1, NPIX)          f32  masked GAP weights: 1/(H*W) on real pixels, 0 on junk
    wf_ref     : (F, NCLS_PAD)      cdt  fc weight, lane padded
    bf_ref     : (1, NCLS_PAD)      f32  fc bias, lane padded
    o_ref      : (Bt, 1, NCLS_PAD)  f32  logits (lane-dense store)
    patches_ref: (9*C, NPIX)        cdt  VMEM scratch, im2col in (contraction, pixels) layout
    """
    Bt = x_ref.shape[0]
    Wp = W + 2
    npix = gap_ref.shape[1]            # = H * (W + 2): real pixels + 2 junk cols per row
    cdt = patches_ref.dtype

    for b in range(Bt):
        # --- im2col: 9 independent, contiguous, lane-dense (C, NPIX) copies ----------
        # Tap (kh, kw) over the row-flattened padded image is a single 1D window starting
        # at kh*Wp + kw; the 2 wrap-around ("junk") columns per row it also produces are
        # simply never counted by the GAP vector below.
        for kh in range(3):
            for kw in range(3):
                rowblk = (kh * 3 + kw) * C
                start = kh * Wp + kw
                patches_ref[rowblk:rowblk + C, :] = (
                    x_ref[b, :, start:start + npix].astype(cdt))

        # --- conv as ONE (F, 9C) @ (9C, NPIX) MXU dot, f32 accumulation --------------
        act = jnp.dot(wc_ref[...], patches_ref[...],
                      preferred_element_type=jnp.float32)          # (F, NPIX) f32
        act = jnp.maximum(act + bc_ref[...], 0.0)

        # --- masked global average pool as a matvec (junk cols weighted 0) -----------
        pooled = lax.dot_general(gap_ref[...], act,
                                 (((1,), (1,)), ((), ())),
                                 preferred_element_type=jnp.float32)  # (1, F) f32

        # --- FC classifier, lane-dense padded logits ----------------------------------
        logits = jnp.dot(pooled.astype(cdt), wf_ref[...],
                         preferred_element_type=jnp.float32) + bf_ref[...]
        o_ref[b] = logits.astype(o_ref.dtype)


def model_wrapper_forward(x_nchw, mean, std, w_conv, b_conv, w_fc, b_fc,
                          *, compute_dtype=jnp.bfloat16, batch_block=None):
    """Eval-mode ModelWrapper forward.  x_nchw: (B, C, H, W) float32 (PyTorch layout)."""
    B, C, H, W = x_nchw.shape
    F = b_conv.shape[0]
    NCLS = b_fc.shape[0]
    NCLS_PAD = _round_up(NCLS, 128)            # lane-dense output
    Hp, Wp = H + 2, W + 2
    NPIX = H * Wp                              # computed "pixels" (incl. 2 junk cols/row)
    FLAT = _round_up(Hp * Wp + 2, 128)         # flattened padded spatial + tap-overrun slack

    if batch_block is None:                    # keep >=2 grid steps (v7x megacore) when B>=2
        batch_block = max(1, B // 2)
        while B % batch_block:
            batch_block -= 1
    Bt = batch_block
    assert B % Bt == 0

    f32 = jnp.float32

    # preprocess staging: center by the mean here (must precede zero-padding); the 1/std
    # factor is folded into the conv weights below, so the kernel needs no masks at all.
    xc = x_nchw.astype(f32) - mean.astype(f32).reshape(1, C, 1, 1)
    xp = jnp.pad(xc, ((0, 0), (0, 0), (1, 1), (1, 1)))            # == SAME pad of (x-mean)/std
    x_flat = xp.reshape(B, C, Hp * Wp)
    x_flat = jnp.pad(x_flat, ((0, 0), (0, 0), (0, FLAT - Hp * Wp)))

    # conv weights: fold 1/std per input channel, flatten HWIO -> (kh,kw,c), transpose to
    # the (F, 9C) orientation used by the kernel.
    istd = (1.0 / std.astype(f32)).reshape(1, 1, C, 1)
    wc2 = (w_conv.astype(f32) * istd).reshape(9 * C, F).T.astype(compute_dtype)  # (F, 9C)
    bc_col = b_conv.astype(f32).reshape(F, 1)

    # masked GAP weights: 1/(H*W) on real output pixels, 0 on the 2 junk columns per row.
    col = np.arange(NPIX) % Wp
    gap = jnp.asarray((col < W).astype(np.float32) / float(H * W)).reshape(1, NPIX)

    # FC weights / bias lane-padded; logits sliced back after the call.
    wf_pad = jnp.zeros((F, NCLS_PAD), f32).at[:, :NCLS].set(w_fc.astype(f32))
    wf_pad = wf_pad.astype(compute_dtype)
    bf_pad = jnp.zeros((1, NCLS_PAD), f32).at[:, :NCLS].set(b_fc.astype(f32))

    kernel = functools.partial(_model_wrapper_kernel, H=H, W=W, C=C)

    # VMEM budget: double-buffered image block + weights + patches scratch + activation.
    bpe = jnp.dtype(compute_dtype).itemsize
    vmem_bytes = (2 * Bt * C * FLAT * 4                       # image block (x2 buffers)
                  + 9 * C * NPIX * bpe                        # patches scratch
                  + F * NPIX * 4                              # conv activation (f32)
                  + (F * 9 * C + F * NCLS_PAD) * bpe          # weights
                  + 4 * (NPIX + 2 * NCLS_PAD + F)) * 2 + (1 << 20)
    vmem_limit = int(min(96 * 2 ** 20, max(4 * 2 ** 20, vmem_bytes)))

    flops = 2 * B * NPIX * (9 * C) * F + 2 * B * F * NPIX + 2 * B * F * NCLS_PAD
    bytes_accessed = 4 * (x_flat.size + B * NCLS_PAD) + bpe * (wc2.size + wf_pad.size)

    out = pl.pallas_call(
        kernel,
        out_shape=jax.ShapeDtypeStruct((B, 1, NCLS_PAD), f32),
        grid=(B // Bt,),
        in_specs=[
            pl.BlockSpec((Bt, C, FLAT), lambda i: (i, 0, 0)),      # image block (lane-dense)
            pl.BlockSpec((F, 9 * C), lambda i: (0, 0)),            # conv weight
            pl.BlockSpec((F, 1), lambda i: (0, 0)),                # conv bias
            pl.BlockSpec((1, NPIX), lambda i: (0, 0)),             # masked GAP weights
            pl.BlockSpec((F, NCLS_PAD), lambda i: (0, 0)),         # fc weight (padded)
            pl.BlockSpec((1, NCLS_PAD), lambda i: (0, 0)),         # fc bias (padded)
        ],
        out_specs=pl.BlockSpec((Bt, 1, NCLS_PAD), lambda i: (i, 0, 0)),
        scratch_shapes=[pltpu.VMEM((9 * C, NPIX), compute_dtype)],
        compiler_params=pltpu.CompilerParams(
            dimension_semantics=("parallel",),
            vmem_limit_bytes=vmem_limit),
        cost_estimate=pl.CostEstimate(flops=flops, transcendentals=0,
                                      bytes_accessed=bytes_accessed),
    )(x_flat, wc2, bc_col, gap, wf_pad, bf_pad)

    return out[:, 0, :NCLS]


def _reference_forward(x_nchw, mean, std, w_conv, b_conv, w_fc, b_fc):
    """Pure-JAX reference (NHWC / HWIO), same semantics as the kernel."""
    x = jnp.transpose(x_nchw, (0, 2, 3, 1)).astype(jnp.float32)
    xn = (x - mean.reshape(1, 1, 1, -1)) / std.reshape(1, 1, 1, -1)
    y = lax.conv_general_dilated(
        xn, w_conv, window_strides=(1, 1), padding="SAME",
        dimension_numbers=("NHWC", "HWIO", "NHWC"))
    y = jnp.maximum(y + b_conv.reshape(1, 1, 1, -1), 0.0)
    pooled = jnp.mean(y, axis=(1, 2))
    return pooled @ w_fc + b_fc.reshape(1, -1)


if __name__ == "__main__":
    # Small, deterministic setup (synthetic weights; no checkpoint load).
    B, C, H, W = 2, 4, 16, 16     # input, NCHW like PyTorch
    F, NCLS = 32, 8               # hidden channels, num classes

    key = jax.random.PRNGKey(0)
    kx, kwc, kbc, kwf, kbf = jax.random.split(key, 5)

    x = jax.random.normal(kx, (B, C, H, W), dtype=jnp.float32)

    # preprocess params (ImageNet-style normalization, per channel)
    mean = jnp.array([0.485, 0.456, 0.406, 0.5][:C], dtype=jnp.float32)
    std = jnp.array([0.229, 0.224, 0.225, 0.25][:C], dtype=jnp.float32)

    # model params
    w_conv = 0.1 * jax.random.normal(kwc, (3, 3, C, F), dtype=jnp.float32)  # HWIO
    b_conv = 0.1 * jax.random.normal(kbc, (F,), dtype=jnp.float32)
    w_fc = 0.1 * jax.random.normal(kwf, (F, NCLS), dtype=jnp.float32)
    b_fc = 0.1 * jax.random.normal(kbf, (NCLS,), dtype=jnp.float32)

    ref = _reference_forward(x, mean, std, w_conv, b_conv, w_fc, b_fc)

    # 1) f32 compute path: proves the fused im2col / folding structure is exact.
    out_f32 = jax.block_until_ready(
        model_wrapper_forward(x, mean, std, w_conv, b_conv, w_fc, b_fc,
                              compute_dtype=jnp.float32))
    np.testing.assert_allclose(np.asarray(out_f32), np.asarray(ref),
                               rtol=1e-4, atol=1e-4)

    # 2) production path: bf16 MXU operands, f32 accumulation (bf16-appropriate tol).
    out_bf16 = jax.block_until_ready(
        model_wrapper_forward(x, mean, std, w_conv, b_conv, w_fc, b_fc,
                              compute_dtype=jnp.bfloat16))
    np.testing.assert_allclose(np.asarray(out_bf16), np.asarray(ref),
                               rtol=5e-2, atol=5e-2)

    print("KERNEL_OK")
</pallas_src>

<mosaic_0001>
module attributes {stable_mosaic.version = 11 : i64} {
  func.func @_model_wrapper_kernel(%arg0: i32, %arg1: memref<1x4x384xf32, #tpu.memory_space<vmem>>, %arg2: memref<32x36xf32, #tpu.memory_space<vmem>>, %arg3: memref<32x1xf32, #tpu.memory_space<vmem>>, %arg4: memref<1x288xf32, #tpu.memory_space<vmem>>, %arg5: memref<32x128xf32, #tpu.memory_space<vmem>>, %arg6: memref<1x128xf32, #tpu.memory_space<vmem>>, %arg7: memref<1x1x128xf32, #tpu.memory_space<vmem>>, %arg8: memref<36x288xf32, #tpu.memory_space<vmem>>) attributes {dimension_semantics = [#tpu.dimension_semantics<parallel>], iteration_bounds = array<i64: 2>, scalar_prefetch = 0 : i64, scratch_operands = 1 : i64, tpu.core_type = #tpu.core_type<tc>, window_params = [{transform_indices = @transform_0, window_bounds = array<i64: 1, 4, 384>}, {pipeline_mode = #tpu.pipeline_mode<synchronous>, transform_indices = @transform_1, window_bounds = array<i64: 32, 36>}, {pipeline_mode = #tpu.pipeline_mode<synchronous>, transform_indices = @transform_2, window_bounds = array<i64: 32, 1>}, {pipeline_mode = #tpu.pipeline_mode<synchronous>, transform_indices = @transform_3, window_bounds = array<i64: 1, 288>}, {pipeline_mode = #tpu.pipeline_mode<synchronous>, transform_indices = @transform_4, window_bounds = array<i64: 32, 128>}, {pipeline_mode = #tpu.pipeline_mode<synchronous>, transform_indices = @transform_5, window_bounds = array<i64: 1, 128>}, {transform_indices = @transform_6, window_bounds = array<i64: 1, 1, 128>}]} {
    %c0 = arith.constant 0 : index
    %c0_0 = arith.constant 0 : index
    %c0_1 = arith.constant 0 : index
    %0 = vector.load %arg1[%c0, %c0_0, %c0_1] : memref<1x4x384xf32, #tpu.memory_space<vmem>>, vector<1x4x288xf32>
    %1 = vector.shape_cast %0 : vector<1x4x288xf32> to vector<4x288xf32>
    %c0_2 = arith.constant 0 : index
    %c0_3 = arith.constant 0 : index
    %2 = vector.load %arg8[%c0_2, %c0_3] : memref<36x288xf32, #tpu.memory_space<vmem>>, vector<4x288xf32>
    tpu.vector_store %arg8[%c0_2, %c0_3], %1 {strides = array<i32>} : memref<36x288xf32, #tpu.memory_space<vmem>>, vector<4x288xf32>,
    %c0_4 = arith.constant 0 : index
    %c0_5 = arith.constant 0 : index
    %c1 = arith.constant 1 : index
    %3 = vector.load %arg1[%c0_4, %c0_5, %c1] : memref<1x4x384xf32, #tpu.memory_space<vmem>>, vector<1x4x288xf32>
    %4 = vector.shape_cast %3 : vector<1x4x288xf32> to vector<4x288xf32>
    %c4 = arith.constant 4 : index
    %c0_6 = arith.constant 0 : index
    %5 = vector.load %arg8[%c4, %c0_6] : memref<36x288xf32, #tpu.memory_space<vmem>>, vector<4x288xf32>
    tpu.vector_store %arg8[%c4, %c0_6], %4 {strides = array<i32>} : memref<36x288xf32, #tpu.memory_space<vmem>>, vector<4x288xf32>,
    %c0_7 = arith.constant 0 : index
    %c0_8 = arith.constant 0 : index
    %c2 = arith.constant 2 : index
    %6 = vector.load %arg1[%c0_7, %c0_8, %c2] : memref<1x4x384xf32, #tpu.memory_space<vmem>>, vector<1x4x288xf32>
    %7 = vector.shape_cast %6 : vector<1x4x288xf32> to vector<4x288xf32>
    %c8 = arith.constant 8 : index
    %c0_9 = arith.constant 0 : index
    %8 = vector.load %arg8[%c8, %c0_9] : memref<36x288xf32, #tpu.memory_space<vmem>>, vector<4x288xf32>
    tpu.vector_store %arg8[%c8, %c0_9], %7 {strides = array<i32>} : memref<36x288xf32, #tpu.memory_space<vmem>>, vector<4x288xf32>,
    %c0_10 = arith.constant 0 : index
    %c0_11 = arith.constant 0 : index
    %c18 = arith.constant 18 : index
    %9 = vector.load %arg1[%c0_10, %c0_11, %c18] : memref<1x4x384xf32, #tpu.memory_space<vmem>>, vector<1x4x288xf32>
    %10 = vector.shape_cast %9 : vector<1x4x288xf32> to vector<4x288xf32>
    %c12 = arith.constant 12 : index
    %c0_12 = arith.constant 0 : index
    %11 = vector.load %arg8[%c12, %c0_12] : memref<36x288xf32, #tpu.memory_space<vmem>>, vector<4x288xf32>
    tpu.vector_store %arg8[%c12, %c0_12], %10 {strides = array<i32>} : memref<36x288xf32, #tpu.memory_space<vmem>>, vector<4x288xf32>,
    %c0_13 = arith.constant 0 : index
    %c0_14 = arith.constant 0 : index
    %c19 = arith.constant 19 : index
    %12 = vector.load %arg1[%c0_13, %c0_14, %c19] : memref<1x4x384xf32, #tpu.memory_space<vmem>>, vector<1x4x288xf32>
    %13 = vector.shape_cast %12 : vector<1x4x288xf32> to vector<4x288xf32>
    %c16 = arith.constant 16 : index
    %c0_15 = arith.constant 0 : index
    %14 = vector.load %arg8[%c16, %c0_15] : memref<36x288xf32, #tpu.memory_space<vmem>>, vector<4x288xf32>
    tpu.vector_store %arg8[%c16, %c0_15], %13 {strides = array<i32>} : memref<36x288xf32, #tpu.memory_space<vmem>>, vector<4x288xf32>,
    %c0_16 = arith.constant 0 : index
    %c0_17 = arith.constant 0 : index
    %c20 = arith.constant 20 : index
    %15 = vector.load %arg1[%c0_16, %c0_17, %c20] : memref<1x4x384xf32, #tpu.memory_space<vmem>>, vector<1x4x288xf32>
    %16 = vector.shape_cast %15 : vector<1x4x288xf32> to vector<4x288xf32>
    %c20_18 = arith.constant 20 : index
    %c0_19 = arith.constant 0 : index
    %17 = vector.load %arg8[%c20_18, %c0_19] : memref<36x288xf32, #tpu.memory_space<vmem>>, vector<4x288xf32>
    tpu.vector_store %arg8[%c20_18, %c0_19], %16 {strides = array<i32>} : memref<36x288xf32, #tpu.memory_space<vmem>>, vector<4x288xf32>,
    %c0_20 = arith.constant 0 : index
    %c0_21 = arith.constant 0 : index
    %c36 = arith.constant 36 : index
    %18 = vector.load %arg1[%c0_20, %c0_21, %c36] : memref<1x4x384xf32, #tpu.memory_space<vmem>>, vector<1x4x288xf32>
    %19 = vector.shape_cast %18 : vector<1x4x288xf32> to vector<4x288xf32>
    %c24 = arith.constant 24 : index
    %c0_22 = arith.constant 0 : index
    %20 = vector.load %arg8[%c24, %c0_22] : memref<36x288xf32, #tpu.memory_space<vmem>>, vector<4x288xf32>
    tpu.vector_store %arg8[%c24, %c0_22], %19 {strides = array<i32>} : memref<36x288xf32, #tpu.memory_space<vmem>>, vector<4x288xf32>,
    %c0_23 = arith.constant 0 : index
    %c0_24 = arith.constant 0 : index
    %c37 = arith.constant 37 : index
    %21 = vector.load %arg1[%c0_23, %c0_24, %c37] : memref<1x4x384xf32, #tpu.memory_space<vmem>>, vector<1x4x288xf32>
    %22 = vector.shape_cast %21 : vector<1x4x288xf32> to vector<4x288xf32>
    %c28 = arith.constant 28 : index
    %c0_25 = arith.constant 0 : index
    %23 = vector.load %arg8[%c28, %c0_25] : memref<36x288xf32, #tpu.memory_space<vmem>>, vector<4x288xf32>
    tpu.vector_store %arg8[%c28, %c0_25], %22 {strides = array<i32>} : memref<36x288xf32, #tpu.memory_space<vmem>>, vector<4x288xf32>,
    %c0_26 = arith.constant 0 : index
    %c0_27 = arith.constant 0 : index
    %c38 = arith.constant 38 : index
    %24 = vector.load %arg1[%c0_26, %c0_27, %c38] : memref<1x4x384xf32, #tpu.memory_space<vmem>>, vector<1x4x288xf32>
    %25 = vector.shape_cast %24 : vector<1x4x288xf32> to vector<4x288xf32>
    %c32 = arith.constant 32 : index
    %c0_28 = arith.constant 0 : index
    %26 = vector.load %arg8[%c32, %c0_28] : memref<36x288xf32, #tpu.memory_space<vmem>>, vector<4x288xf32>
    tpu.vector_store %arg8[%c32, %c0_28], %25 {strides = array<i32>} : memref<36x288xf32, #tpu.memory_space<vmem>>, vector<4x288xf32>,
    %c0_29 = arith.constant 0 : index
    %c0_30 = arith.constant 0 : index
    %27 = vector.load %arg2[%c0_29, %c0_30] : memref<32x36xf32, #tpu.memory_space<vmem>>, vector<32x36xf32>
    %c0_31 = arith.constant 0 : index
    %c0_32 = arith.constant 0 : index
    %28 = vector.load %arg8[%c0_31, %c0_32] : memref<36x288xf32, #tpu.memory_space<vmem>>, vector<36x288xf32>
    %cst = arith.constant dense<0.000000e+00> : vector<32x288xf32>
    %29 = tpu.matmul %27, %28, %cst {dimension_numbers = #tpu.dot_dimension_numbers<[1], [0], [0], [1], [0, 0, 1, 1], [], []>} : vector<32x36xf32>, vector<36x288xf32>, vector<32x288xf32> -> vector<32x288xf32>
    %c0_33 = arith.constant 0 : index
    %c0_34 = arith.constant 0 : index
    %30 = vector.load %arg3[%c0_33, %c0_34] : memref<32x1xf32, #tpu.memory_space<vmem>>, vector<32x1xf32>
    %31 = vector.broadcast %30 : vector<32x1xf32> to vector<32x288xf32>
    %32 = arith.addf %29, %31 : vector<32x288xf32>
    %cst_35 = arith.constant 0.000000e+00 : f32
    %33 = vector.broadcast %cst_35 : f32 to vector<32x288xf32>
    %34 = arith.maximumf %32, %33 : vector<32x288xf32>
    %c0_36 = arith.constant 0 : index
    %c0_37 = arith.constant 0 : index
    %35 = vector.load %arg4[%c0_36, %c0_37] : memref<1x288xf32, #tpu.memory_space<vmem>>, vector<1x288xf32>
    %cst_38 = arith.constant dense<0.000000e+00> : vector<1x32xf32>
    %36 = tpu.matmul %35, %34, %cst_38 {dimension_numbers = #tpu.dot_dimension_numbers<[1], [1], [0], [0], [0, 0, 1, 0], [], []>} : vector<1x288xf32>, vector<32x288xf32>, vector<1x32xf32> -> vector<1x32xf32>
    %c0_39 = arith.constant 0 : index
    %c0_40 = arith.constant 0 : index
    %37 = vector.load %arg5[%c0_39, %c0_40] : memref<32x128xf32, #tpu.memory_space<vmem>>, vector<32x128xf32>
    %cst_41 = arith.constant dense<0.000000e+00> : vector<1x128xf32>
    %38 = tpu.matmul %36, %37, %cst_41 {dimension_numbers = #tpu.dot_dimension_numbers<[1], [0], [0], [1], [0, 0, 1, 1], [], []>} : vector<1x32xf32>, vector<32x128xf32>, vector<1x128xf32> -> vector<1x128xf32>
    %c0_42 = arith.constant 0 : index
    %c0_43 = arith.constant 0 : index
    %39 = vector.load %arg6[%c0_42, %c0_43] : memref<1x128xf32, #tpu.memory_space<vmem>>, vector<1x128xf32>
    %40 = arith.addf %38, %39 : vector<1x128xf32>
    %c0_44 = arith.constant 0 : index
    %c0_45 = arith.constant 0 : index
    %c0_46 = arith.constant 0 : index
    %41 = vector.load %arg7[%c0_44, %c0_45, %c0_46] : memref<1x1x128xf32, #tpu.memory_space<vmem>>, vector<1x1x128xf32>
    %42 = vector.shape_cast %41 : vector<1x1x128xf32> to vector<1x128xf32>
    %43 = vector.shape_cast %40 : vector<1x128xf32> to vector<1x1x128xf32>
    tpu.vector_store %arg7[%c0_44, %c0_45, %c0_46], %43 {strides = array<i32>} : memref<1x1x128xf32, #tpu.memory_space<vmem>>, vector<1x1x128xf32>,
    return
  }
  func.func @transform_0(%arg0: i32) -> (i32, i32, i32) {
    %c0_i32 = arith.constant 0 : i32
    %c0_i32_0 = arith.constant 0 : i32
    %c0_i32_1 = arith.constant 0 : i32
    return %arg0, %c0_i32, %c0_i32_0 : i32, i32, i32
  }
  func.func @transform_1(%arg0: i32) -> (i32, i32) {
    %c0_i32 = arith.constant 0 : i32
    %c0_i32_0 = arith.constant 0 : i32
    %c0_i32_1 = arith.constant 0 : i32
    return %c0_i32, %c0_i32_0 : i32, i32
  }
  func.func @transform_2(%arg0: i32) -> (i32, i32) {
    %c0_i32 = arith.constant 0 : i32
    %c0_i32_0 = arith.constant 0 : i32
    %c0_i32_1 = arith.constant 0 : i32
    return %c0_i32, %c0_i32_0 : i32, i32
  }
  func.func @transform_3(%arg0: i32) -> (i32, i32) {
    %c0_i32 = arith.constant 0 : i32
    %c0_i32_0 = arith.constant 0 : i32
    %c0_i32_1 = arith.constant 0 : i32
    return %c0_i32, %c0_i32_0 : i32, i32
  }
  func.func @transform_4(%arg0: i32) -> (i32, i32) {
    %c0_i32 = arith.constant 0 : i32
    %c0_i32_0 = arith.constant 0 : i32
    %c0_i32_1 = arith.constant 0 : i32
    return %c0_i32, %c0_i32_0 : i32, i32
  }
  func.func @transform_5(%arg0: i32) -> (i32, i32) {
    %c0_i32 = arith.constant 0 : i32
    %c0_i32_0 = arith.constant 0 : i32
    %c0_i32_1 = arith.constant 0 : i32
    return %c0_i32, %c0_i32_0 : i32, i32
  }
  func.func @transform_6(%arg0: i32) -> (i32, i32, i32) {
    %c0_i32 = arith.constant 0 : i32
    %c0_i32_0 = arith.constant 0 : i32
    %c0_i32_1 = arith.constant 0 : i32
    return %arg0, %c0_i32, %c0_i32_0 : i32, i32, i32
  }
}

</mosaic_0001>

<llo_original>
// kernel: tpu_custom_call.1
$region0: #{tpu_custom_call.1}
  #allocation0 [shape = 'u32[]', space=smem, size = 0x4, offset = 0x4, fixed_abs, tag = 'smem constant byte address 0x4 - core index']
  #allocation1 [shape = 'u32[144,128]{1,0:T(1,128)}', space=vmem, size = 0x12000, scoped, tag = 'internal scratch']
  #allocation2 [shape = 'f32[36,288]{1,0:T(8,128)}', space=vmem, size = 0xf000, scoped, tag = 'scratch operand']
  %s0 = inlined_call_operand.hbm [shape: f32[2,4,384], index: 0, kind: input, shape index: {}]
  %s1 = inlined_call_operand.vmem [shape: f32[32,36], index: 1, kind: input, shape index: {}]
  %s2 = inlined_call_operand.vmem [shape: f32[32,1], index: 2, kind: input, shape index: {}]
  %s3 = inlined_call_operand.vmem [shape: f32[1,288], index: 3, kind: input, shape index: {}]
  %s4 = inlined_call_operand.hbm [shape: f32[32,128], index: 4, kind: input, shape index: {}]
  %s5 = inlined_call_operand.vmem [shape: f32[1,128], index: 5, kind: input, shape index: {}]
  %s6 = inlined_call_operand.hbm [shape: f32[2,1,128], index: 6, kind: output, shape index: {}]
  %s7 = sld [smem:[#allocation0]]
  $region65: #{tpu_custom_call.1} parent=0
    _
  %s9 = ssub.s32 1, %s7
  %s10 = scalar_select 0, %s9, %s7
  $region1: #{tpu_custom_call.1} parent=0
    #allocation3 [shape = 'u8[12288]{0}', space=vmem, size = 0x3000, scoped, tag = 'input window, operand 0']
    #allocation4 [shape = 's32[2]{0}', space=sflag, size = 0x8, scoped, tag = 'scoped memory for tpu_custom_call.1']
    #allocation5 [shape = 's32[2]{0}', space=sflag, size = 0x8, scoped, tag = 'scoped memory for tpu_custom_call.1']
    #allocation6 [shape = 'u8[16384]{0}', space=vmem, size = 0x4000, scoped, tag = 'input window, operand 4, single buffered']
    #allocation7 [shape = 's32[1]{0}', space=sflag, size = 0x4, scoped, tag = 'scoped memory for tpu_custom_call.1']
    #allocation8 [shape = 'u8[1024]{0}', space=vmem, size = 0x400, scoped, tag = 'output window, operand 0']
    %11 = vsyncpa [#allocation4], 0
    %s12 = scalar_lea.sflag [#allocation4], 1
    %13 = vsyncpa %s12, 0
    %14 = vsyncpa [#allocation7], 0
    %15 = vsyncpa [#allocation5], 0
    %s16 = scalar_lea.sflag [#allocation5], 1
    %17 = vsyncpa %s16, 0
    loop: start=0, step=1, limit=4
    $region2: #{tpu_custom_call.1} parent=1 // loop_pre_header
      _
    $region3: #{tpu_custom_call.1} parent=1 // loop_header
      %s19 = sphi 0, %s23
      %p20 = scmp.ge.s32.totalorder %s19, 4
      %s29 = sphi 0, %s31
      %s32 = sphi 0, %s29
      %s33 = sphi 0, %s32
      %s49 = sphi 0, %s33
      %s53 = sphi 0, %s53
      %s55 = sphi 0, %s53
      %s56 = sphi 0, %s55
      %s70 = sphi 0, %s56
      %s74 = sphi 0, %s74
      %s76 = sphi 0, %s74
      %s77 = sphi 0, %s76
      %s91 = sphi 0, %s77
      %s95 = sphi 0, %s95
      %s97 = sphi 0, %s95
      %s98 = sphi 0, %s97
      %s112 = sphi 0, %s98
      %s116 = sphi 0, %s116
      %s118 = sphi 0, %s116
      %s119 = sphi 0, %s118
      %s133 = sphi 0, %s119
      %s137 = sphi 0, %s137
      %s139 = sphi 0, %s137
      %s140 = sphi 0, %s139
      %s154 = sphi 0, %s140
      %s160 = sphi 0, %s162
      %s163 = sphi 0, %s160
      %s164 = sphi 0, %s163
      %s180 = sphi 0, %s164
    $region4: #{tpu_custom_call.1} parent=1 // loop_header_branch
      %22 = sbr.rel (%p20) target = $region8
    $region5: #{tpu_custom_call.1} parent=1 // loop_body
      %s24 = ssub.s32 %s19, 1
      %s25 = ssub.s32 %s19, 2
      %s26 = sadd.s32 %s19, 1
      %s27 = ssub.s32 %s19, %s26
      %p28 = scmp.eq.s32.totalorder %s27, 0
      %s30 = sadd.s32 %s29, 1
      %s31 = scalar_select %p28, %s29, %s30
      %p34 = pneg %p28
      %p35 = scmp.eq.s32.totalorder %s19, 1
      %p36 = por %p34, %p35
      %p37 = scmp.ne.s32.totalorder %s29, %s32
      %p38 = scmp.eq.s32.totalorder %s19, 0
      %p39 = por %p37, %p38
      %p40 = scmp.ne.s32.totalorder %s29, %s32
      %p41 = scmp.eq.s32.totalorder %s24, 1
      %p42 = por %p40, %p41
      %p43 = scmp.ne.s32.totalorder %s32, %s33
      %p44 = scmp.eq.s32.totalorder %s24, 0
      %p45 = por %p43, %p44
      %p46 = scmp.ne.s32.totalorder %s32, %s33
      %p47 = scmp.eq.s32.totalorder %s25, 1
      %p48 = por %p46, %p47
      %p50 = scmp.ne.s32.totalorder %s33, %s49
      %p51 = scmp.eq.s32.totalorder %s25, 0
      %p52 = por %p50, %p51
      %s54 = sadd.s32 %s53, 1
      %p57 = scmp.eq.s32.totalorder %s19, 1
      %p58 = scmp.ne.s32.totalorder %s53, %s55
      %p59 = scmp.eq.s32.totalorder %s19, 0
      %p60 = por %p58, %p59
      %p61 = scmp.ne.s32.totalorder %s53, %s55
      %p62 = scmp.eq.s32.totalorder %s24, 1
      %p63 = por %p61, %p62
      %p64 = scmp.ne.s32.totalorder %s55, %s56
      %p65 = scmp.eq.s32.totalorder %s24, 0
      %p66 = por %p64, %p65
      %p67 = scmp.ne.s32.totalorder %s55, %s56
      %p68 = scmp.eq.s32.totalorder %s25, 1
      %p69 = por %p67, %p68
      %p71 = scmp.ne.s32.totalorder %s56, %s70
      %p72 = scmp.eq.s32.totalorder %s25, 0
      %p73 = por %p71, %p72
      %s75 = sadd.s32 %s74, 1
      %p78 = scmp.eq.s32.totalorder %s19, 1
      %p79 = scmp.ne.s32.totalorder %s74, %s76
      %p80 = scmp.eq.s32.totalorder %s19, 0
      %p81 = por %p79, %p80
      %p82 = scmp.ne.s32.totalorder %s74, %s76
      %p83 = scmp.eq.s32.totalorder %s24, 1
      %p84 = por %p82, %p83
      %p85 = scmp.ne.s32.totalorder %s76, %s77
      %p86 = scmp.eq.s32.totalorder %s24, 0
      %p87 = por %p85, %p86
      %p88 = scmp.ne.s32.totalorder %s76, %s77
      %p89 = scmp.eq.s32.totalorder %s25, 1
      %p90 = por %p88, %p89
      %p92 = scmp.ne.s32.totalorder %s77, %s91
      %p93 = scmp.eq.s32.totalorder %s25, 0
      %p94 = por %p92, %p93
      %s96 = sadd.s32 %s95, 1
      %p99 = scmp.eq.s32.totalorder %s19, 1
      %p100 = scmp.ne.s32.totalorder %s95, %s97
      %p101 = scmp.eq.s32.totalorder %s19, 0
      %p102 = por %p100, %p101
      %p103 = scmp.ne.s32.totalorder %s95, %s97
      %p104 = scmp.eq.s32.totalorder %s24, 1
      %p105 = por %p103, %p104
      %p106 = scmp.ne.s32.totalorder %s97, %s98
      %p107 = scmp.eq.s32.totalorder %s24, 0
      %p108 = por %p106, %p107
      %p109 = scmp.ne.s32.totalorder %s97, %s98
      %p110 = scmp.eq.s32.totalorder %s25, 1
      %p111 = por %p109, %p110
      %p113 = scmp.ne.s32.totalorder %s98, %s112
      %p114 = scmp.eq.s32.totalorder %s25, 0
      %p115 = por %p113, %p114
      %s117 = sadd.s32 %s116, 1
      %p120 = scmp.eq.s32.totalorder %s19, 1
      %p121 = scmp.ne.s32.totalorder %s116, %s118
      %p122 = scmp.eq.s32.totalorder %s19, 0
      %p123 = por %p121, %p122
      %p124 = scmp.ne.s32.totalorder %s116, %s118
      %p125 = scmp.eq.s32.totalorder %s24, 1
      %p126 = por %p124, %p125
      %p127 = scmp.ne.s32.totalorder %s118, %s119
      %p128 = scmp.eq.s32.totalorder %s24, 0
      %p129 = por %p127, %p128
      %p130 = scmp.ne.s32.totalorder %s118, %s119
      %p131 = scmp.eq.s32.totalorder %s25, 1
      %p132 = por %p130, %p131
      %p134 = scmp.ne.s32.totalorder %s119, %s133
      %p135 = scmp.eq.s32.totalorder %s25, 0
      %p136 = por %p134, %p135
      %s138 = sadd.s32 %s137, 1
      %p141 = scmp.eq.s32.totalorder %s19, 1
      %p142 = scmp.ne.s32.totalorder %s137, %s139
      %p143 = scmp.eq.s32.totalorder %s19, 0
      %p144 = por %p142, %p143
      %p145 = scmp.ne.s32.totalorder %s137, %s139
      %p146 = scmp.eq.s32.totalorder %s24, 1
      %p147 = por %p145, %p146
      %p148 = scmp.ne.s32.totalorder %s139, %s140
      %p149 = scmp.eq.s32.totalorder %s24, 0
      %p150 = por %p148, %p149
      %p151 = scmp.ne.s32.totalorder %s139, %s140
      %p152 = scmp.eq.s32.totalorder %s25, 1
      %p153 = por %p151, %p152
      %p155 = scmp.ne.s32.totalorder %s140, %s154
      %p156 = scmp.eq.s32.totalorder %s25, 0
      %p157 = por %p155, %p156
      %s158 = ssub.s32 %s19, %s26
      %p159 = scmp.eq.s32.totalorder %s158, 0
      %s161 = sadd.s32 %s160, 1
      %s162 = scalar_select %p159, %s160, %s161
      %p165 = pneg %p159
      %p166 = scmp.eq.s32.totalorder %s19, 1
      %p167 = por %p165, %p166
      %p168 = scmp.ne.s32.totalorder %s160, %s163
      %p169 = scmp.eq.s32.totalorder %s19, 0
      %p170 = por %p168, %p169
      %p171 = scmp.ne.s32.totalorder %s160, %s163
      %p172 = scmp.eq.s32.totalorder %s24, 1
      %p173 = por %p171, %p172
      %p174 = scmp.ne.s32.totalorder %s163, %s164
      %p175 = scmp.eq.s32.totalorder %s24, 0
      %p176 = por %p174, %p175
      %p177 = scmp.ne.s32.totalorder %s163, %s164
      %p178 = scmp.eq.s32.totalorder %s25, 1
      %p179 = por %p177, %p178
      %p181 = scmp.ne.s32.totalorder %s164, %s180
      %p182 = scmp.eq.s32.totalorder %s25, 0
      %p183 = por %p181, %p182
      %p184 = scmp.le.s32.totalorder 1, %s19
      %p185 = scmp.lt.s32.totalorder %s19, 3
      %p186 = pnand %p184, %p185
      %p187 = pneg %p186
      // Predicated region
      $region9: #{tpu_custom_call.1} parent=5 // pred_check
        _
      $region10: #{tpu_custom_call.1} parent=5 // pred_check_branch
        %189 = sbr.rel (%p186) target = $region12
      $region11: #{tpu_custom_call.1} parent=5 // pred_region
        %s190 = ssub.s32 %s19, 1
        // Predicated region
        $region13: #{tpu_custom_call.1} parent=11 // pred_check
          %p191 = pneg %p66
        $region14: #{tpu_custom_call.1} parent=11 // pred_check_branch
          %193 = sbr.rel (%p191) target = $region16
        $region15: #{tpu_custom_call.1} parent=11 // pred_region
          _
        $region16: #{tpu_custom_call.1} parent=11 // pred_fallthru
          _
        // Predicated region
        $region17: #{tpu_custom_call.1} parent=11 // pred_check
          %p194 = pneg %p87
        $region18: #{tpu_custom_call.1} parent=11 // pred_check_branch
          %196 = sbr.rel (%p194) target = $region20
        $region19: #{tpu_custom_call.1} parent=11 // pred_region
          _
        $region20: #{tpu_custom_call.1} parent=11 // pred_fallthru
          _
        // Predicated region
        $region21: #{tpu_custom_call.1} parent=11 // pred_check
          %p197 = pneg %p108
        $region22: #{tpu_custom_call.1} parent=11 // pred_check_branch
          %199 = sbr.rel (%p197) target = $region24
        $region23: #{tpu_custom_call.1} parent=11 // pred_region
          _
        $region24: #{tpu_custom_call.1} parent=11 // pred_fallthru
          _
        // Predicated region
        $region25: #{tpu_custom_call.1} parent=11 // pred_check
          %p200 = pneg %p129
        $region26: #{tpu_custom_call.1} parent=11 // pred_check_branch
          %202 = sbr.rel (%p200) target = $region28
        $region27: #{tpu_custom_call.1} parent=11 // pred_region
          %s204 = ssub.s32 512, 512
          %205 = vsyncadd [#allocation7], %s204
          %s206 = sshll.u32 [#allocation6], 4
          %s207 = int_to_ptr.vmem [resolvable:$true] %s206
          %212 = dma.hbm_to_vmem [thread:$0]  %s4, 512, %s207, [#allocation7], 128, 128, 8
        $region28: #{tpu_custom_call.1} parent=11 // pred_fallthru
          _
        // Predicated region
        $region29: #{tpu_custom_call.1} parent=11 // pred_check
          %p213 = pneg %p150
        $region30: #{tpu_custom_call.1} parent=11 // pred_check_branch
          %215 = sbr.rel (%p213) target = $region32
        $region31: #{tpu_custom_call.1} parent=11 // pred_region
          _
        $region32: #{tpu_custom_call.1} parent=11 // pred_fallthru
          _
      $region12: #{tpu_custom_call.1} parent=5 // pred_fallthru
        _
      %p216 = scmp.lt.s32.totalorder %s19, 2
      // Predicated region
      $region33: #{tpu_custom_call.1} parent=5 // pred_check
        %p217 = pneg %p216
      $region34: #{tpu_custom_call.1} parent=5 // pred_check_branch
        %219 = sbr.rel (%p217) target = $region36
      $region35: #{tpu_custom_call.1} parent=5 // pred_region
        // Predicated region
        $region37: #{tpu_custom_call.1} parent=35 // pred_check
          %p220 = pneg %p39
        $region38: #{tpu_custom_call.1} parent=35 // pred_check_branch
          %222 = sbr.rel (%p220) target = $region40
        $region39: #{tpu_custom_call.1} parent=35 // pred_region
          %s223 = sand.u32 %s29, 1
          %s224 = scalar_lea.sflag [#allocation4], %s223
          %s225 = sand.u32 %s29, 1
          %s226 = smul.addr %s225, 12
          %s227 = scalar_lea.vmem [#allocation3], %s226
          %s229 = ssub.s32 192, 192
          %230 = vsyncadd %s224, %s229
          %s231 = smul.addr %s19, 3
          %s232 = smul.addr %s231, 64
          %s233 = scalar_lea.hbm %s0, %s232
          %s235 = sshll.u32 %s227, 4
          %s236 = int_to_ptr.vmem [resolvable:$true] %s235
          %238 = dma.hbm_to_vmem [thread:$0]  %s233, 192, %s236, %s224
        $region40: #{tpu_custom_call.1} parent=35 // pred_fallthru
          _
      $region36: #{tpu_custom_call.1} parent=5 // pred_fallthru
        _
      %p239 = scmp.le.s32.totalorder 1, %s19
      %p240 = scmp.lt.s32.totalorder %s19, 3
      %p241 = pnand %p239, %p240
      %p242 = pneg %p241
      // Predicated region
      $region41: #{tpu_custom_call.1} parent=5 // pred_check
        _
      $region42: #{tpu_custom_call.1} parent=5 // pred_check_branch
        %244 = sbr.rel (%p241) target = $region44
      $region43: #{tpu_custom_call.1} parent=5 // pred_region
        %s245 = ssub.s32 %s19, 1
        %s246 = sand.u32 %s32, 1
        %s247 = scalar_lea.sflag [#allocation4], %s246
        %s248 = sand.u32 %s32, 1
        %s249 = smul.addr %s248, 12
        %s250 = scalar_lea.vmem [#allocation3], %s249
        // Predicated region
        $region45: #{tpu_custom_call.1} parent=43 // pred_check
          %p251 = pneg %p45
        $region46: #{tpu_custom_call.1} parent=43 // pred_check_branch
          %253 = sbr.rel (%p251) target = $region48
        $region47: #{tpu_custom_call.1} parent=43 // pred_region
          %254 = dma.done %s247, 192
        $region48: #{tpu_custom_call.1} parent=43 // pred_fallthru
          _
        // Predicated region
        $region49: #{tpu_custom_call.1} parent=43 // pred_check
          %p255 = pneg %p129
        $region50: #{tpu_custom_call.1} parent=43 // pred_check_branch
          %257 = sbr.rel (%p255) target = $region52
        $region51: #{tpu_custom_call.1} parent=43 // pred_region
          %258 = dma.done [#allocation7], 512
        $region52: #{tpu_custom_call.1} parent=43 // pred_fallthru
          _
        %s259 = sand.u32 %s32, 1
        %s260 = scalar_lea.sflag [#allocation4], %s259
        %s261 = sand.u32 %s32, 1
        %s262 = smul.addr %s261, 12
        %s263 = scalar_lea.vmem [#allocation3], %s262
        %p264 = pneg %p45
        %p265 = pneg %p42
        %p266 = pneg %p66
        %p267 = pneg %p63
        %p268 = pneg %p87
        %p269 = pneg %p84
        %p270 = pneg %p108
        %p271 = pneg %p105
        %p272 = pneg %p129
        %p273 = pneg %p126
        %p274 = pneg %p150
        %p275 = pneg %p147
        %p276 = pneg %p176
        %p277 = pneg %p173
        %s278 = sand.u32 %s163, 1
        %s279 = scalar_lea.sflag [#allocation5], %s278
        %s280 = sand.u32 %s163, 1
        %s281 = scalar_lea.vmem [#allocation8], %s280
        %v282 = vld [vmem:[%s250] sm:$0xff]
        %v283 = vld [vmem:[%s250 + $0x8] sm:$0xf]
        %v285 = vcombine.high %v282, %v282
        %287 = vst [vmem:[#allocation2] sm:$0xf] %v282
        %288 = vst [vmem:[#allocation2 + $0x8] sm:$0xf] %v285
        %vm289 = vcmask 257024
        %290 = vst.msk [vmem:[#allocation2 + $0x10] sm:$0xf] %vm289, %v283
        %v291 = vld [vmem:[%s250] sm:$0xff]
        %v292 = vld [vmem:[%s250 + $0x8] sm:$0xf]
        %v295 = vcombine.low %v291, %v291
        %v296 = vcombine.low %v292, %v292
        %297 = vrot.lane.b32.xlu0 %v295, 127
        %v298 = vpop.permute.xlu0 %297
        %299 = vrot.lane.b32.xlu0 %v291, 127
        %v300 = vpop.permute.xlu0 %299
        %301 = vrot.lane.b32.xlu0 %v296, 127
        %v302 = vpop.permute.xlu0 %301
        %vm303 = vcmask 1039360
        %v304 = vsel %vm303, %v298, %v300
        %v305 = vsel %vm303, %v300, %v302
        %309 = vst [vmem:[#allocation2] sm:$0xf0] %v304
        %310 = vst [vmem:[#allocation2 + $0x8] sm:$0xf0] %v305
        %vm311 = vcmask 261124
        %312 = vst.msk [vmem:[#allocation2 + $0x10] sm:$0xf0] %vm311, %v302
        %v313 = vld [vmem:[%s250] sm:$0xff]
        %v314 = vld [vmem:[%s250 + $0x8] sm:$0xf]
        %v317 = vcombine.high %v313, %v313
        %318 = vrot.lane.b32.xlu0 %v313, 126
        %v319 = vpop.permute.xlu0 %318
        %320 = vrot.lane.b32.xlu0 %v317, 126
        %v321 = vpop.permute.xlu0 %320
        %322 = vrot.lane.b32.xlu0 %v314, 126
        %v323 = vpop.permute.xlu0 %322
        %vm324 = vcmask 1031168
        %v325 = vsel %vm324, %v319, %v321
        %v326 = vsel %vm324, %v321, %v323
        %330 = vst [vmem:[#allocation2 + $0x18] sm:$0xf] %v325
        %331 = vst [vmem:[#allocation2 + $0x20] sm:$0xf] %v326
        %332 = vst.msk [vmem:[#allocation2 + $0x28] sm:$0xf] %vm289, %v323
        %v333 = vld [vmem:[%s250] sm:$0xff]
        %v334 = vld [vmem:[%s250 + $0x8] sm:$0xf]
        %v337 = vcombine.low %v333, %v333
        %v338 = vcombine.low %v334, %v334
        %339 = vrot.lane.b32.xlu0 %v337, 110
        %v340 = vpop.permute.xlu0 %339
        %341 = vrot.lane.b32.xlu0 %v333, 110
        %v342 = vpop.permute.xlu0 %341
        %343 = vrot.lane.b32.xlu0 %v338, 110
        %v344 = vpop.permute.xlu0 %343
        %vm345 = vcmask 900096
        %v346 = vsel %vm345, %v340, %v342
        %v347 = vsel %vm345, %v342, %v344
        %351 = vst [vmem:[#allocation2 + $0x18] sm:$0xf0] %v346
        %352 = vst [vmem:[#allocation2 + $0x20] sm:$0xf0] %v347
        %353 = vst.msk [vmem:[#allocation2 + $0x28] sm:$0xf0] %vm311, %v344
        %v354 = vld [vmem:[%s250] sm:$0xff]
        %v355 = vld [vmem:[%s250 + $0x8] sm:$0xf]
        %v358 = vcombine.high %v354, %v354
        %359 = vrot.lane.b32.xlu0 %v354, 109
        %v360 = vpop.permute.xlu0 %359
        %361 = vrot.lane.b32.xlu0 %v358, 109
        %v362 = vpop.permute.xlu0 %361
        %363 = vrot.lane.b32.xlu0 %v355, 109
        %v364 = vpop.permute.xlu0 %363
        %vm365 = vcmask 891904
        %v366 = vsel %vm365, %v360, %v362
        %v367 = vsel %vm365, %v362, %v364
        %371 = vst [vmem:[#allocation2 + $0x30] sm:$0xf] %v366
        %372 = vst [vmem:[#allocation2 + $0x38] sm:$0xf] %v367
        %373 = vst.msk [vmem:[#allocation2 + $0x40] sm:$0xf] %vm289, %v364
        %v374 = vld [vmem:[%s250] sm:$0xff]
        %v375 = vld [vmem:[%s250 + $0x8] sm:$0xf]
        %v378 = vcombine.low %v374, %v374
        %v379 = vcombine.low %v375, %v375
        %380 = vrot.lane.b32.xlu0 %v378, 108
        %v381 = vpop.permute.xlu0 %380
        %382 = vrot.lane.b32.xlu0 %v374, 108
        %v383 = vpop.permute.xlu0 %382
        %384 = vrot.lane.b32.xlu0 %v379, 108
        %v385 = vpop.permute.xlu0 %384
        %vm386 = vcmask 883712
        %v387 = vsel %vm386, %v381, %v383
        %v388 = vsel %vm386, %v383, %v385
        %392 = vst [vmem:[#allocation2 + $0x30] sm:$0xf0] %v387
        %393 = vst [vmem:[#allocation2 + $0x38] sm:$0xf0] %v388
        %394 = vst.msk [vmem:[#allocation2 + $0x40] sm:$0xf0] %vm311, %v385
        %v395 = vld [vmem:[%s250] sm:$0xff]
        %v396 = vld [vmem:[%s250 + $0x8] sm:$0xf]
        %v399 = vcombine.high %v395, %v395
        %400 = vrot.lane.b32.xlu0 %v395, 92
        %v401 = vpop.permute.xlu0 %400
        %402 = vrot.lane.b32.xlu0 %v399, 92
        %v403 = vpop.permute.xlu0 %402
        %404 = vrot.lane.b32.xlu0 %v396, 92
        %v405 = vpop.permute.xlu0 %404
        %vm406 = vcmask 752640
        %v407 = vsel %vm406, %v401, %v403
        %v408 = vsel %vm406, %v403, %v405
        %412 = vst [vmem:[#allocation2 + $0x48] sm:$0xf] %v407
        %413 = vst [vmem:[#allocation2 + $0x50] sm:$0xf] %v408
        %414 = vst.msk [vmem:[#allocation2 + $0x58] sm:$0xf] %vm289, %v405
        %v415 = vld [vmem:[%s250] sm:$0xff]
        %v416 = vld [vmem:[%s250 + $0x8] sm:$0xf]
        %v419 = vcombine.low %v415, %v415
        %v420 = vcombine.low %v416, %v416
        %421 = vrot.lane.b32.xlu0 %v419, 91
        %v422 = vpop.permute.xlu0 %421
        %423 = vrot.lane.b32.xlu0 %v415, 91
        %v424 = vpop.permute.xlu0 %423
        %425 = vrot.lane.b32.xlu0 %v420, 91
        %v426 = vpop.permute.xlu0 %425
        %vm427 = vcmask 744448
        %v428 = vsel %vm427, %v422, %v424
        %v429 = vsel %vm427, %v424, %v426
        %433 = vst [vmem:[#allocation2 + $0x48] sm:$0xf0] %v428
        %434 = vst [vmem:[#allocation2 + $0x50] sm:$0xf0] %v429
        %435 = vst.msk [vmem:[#allocation2 + $0x58] sm:$0xf0] %vm311, %v426
        %v436 = vld [vmem:[%s250] sm:$0xff]
        %v437 = vld [vmem:[%s250 + $0x8] sm:$0xf]
        %v440 = vcombine.high %v436, %v436
        %441 = vrot.lane.b32.xlu0 %v436, 90
        %v442 = vpop.permute.xlu0 %441
        %443 = vrot.lane.b32.xlu0 %v440, 90
        %v444 = vpop.permute.xlu0 %443
        %445 = vrot.lane.b32.xlu0 %v437, 90
        %v446 = vpop.permute.xlu0 %445
        %vm447 = vcmask 736256
        %v448 = vsel %vm447, %v442, %v444
        %v449 = vsel %vm447, %v444, %v446
        %453 = vst [vmem:[#allocation2 + $0x60] sm:$0xf] %v448
        %454 = vst [vmem:[#allocation2 + $0x68] sm:$0xf] %v449
        %455 = vst.msk [vmem:[#allocation2 + $0x70] sm:$0xf] %vm289, %v446
        %v456 = vld [vmem:[%s1] sm:$0xff]
        %v457 = vld [vmem:[%s1 + $0x8] sm:$0xff]
        %v458 = vld [vmem:[%s1 + $0x10] sm:$0xff]
        %v459 = vld [vmem:[%s1 + $0x18] sm:$0xff]
        %v460 = vld [vmem:[#allocation2] sm:$0xff]
        %v461 = vld [vmem:[#allocation2 + $0x8] sm:$0xff]
        %v462 = vld [vmem:[#allocation2 + $0x10] sm:$0xff]
        %v463 = vld [vmem:[#allocation2 + $0x18] sm:$0xff]
        %v464 = vld [vmem:[#allocation2 + $0x20] sm:$0xff]
        %v465 = vld [vmem:[#allocation2 + $0x28] sm:$0xff]
        %v466 = vld [vmem:[#allocation2 + $0x30] sm:$0xff]
        %v467 = vld [vmem:[#allocation2 + $0x38] sm:$0xff]
        %v468 = vld [vmem:[#allocation2 + $0x40] sm:$0xff]
        %v469 = vld [vmem:[#allocation2 + $0x48] sm:$0xff]
        %v470 = vld [vmem:[#allocation2 + $0x50] sm:$0xff]
        %v471 = vld [vmem:[#allocation2 + $0x58] sm:$0xff]
        %v472 = vld [vmem:[#allocation2 + $0x60] sm:$0xf]
        %v473 = vld [vmem:[#allocation2 + $0x68] sm:$0xf]
        %v474 = vld [vmem:[#allocation2 + $0x70] sm:$0xf]
        %v475 = vld [vmem:[%s2] sm:$0xff]
        %v476 = vld [vmem:[%s2 + $0x8] sm:$0xff]
        %v477 = vld [vmem:[%s2 + $0x10] sm:$0xff]
        %v478 = vld [vmem:[%s2 + $0x18] sm:$0xff]
        %480 = vset.pattern.permute.xlu0 0
        %481 = vperm.xlu0 %480, %v475
        %v482 = vpop.permute.xlu0 %481
        %485 = vset.pattern.permute.xlu0 0
        %486 = vperm.xlu0 %485, %v476
        %v487 = vpop.permute.xlu0 %486
        %490 = vset.pattern.permute.xlu0 0
        %491 = vperm.xlu0 %490, %v477
        %v492 = vpop.permute.xlu0 %491
        %495 = vset.pattern.permute.xlu0 0
        %496 = vperm.xlu0 %495, %v478
        %v497 = vpop.permute.xlu0 %496
        %vm499 = vcmask 293888
        %v501 = vsel %vm499, %v456, 0
        %v504 = vsel %vm499, %v457, 0
        %v507 = vsel %vm499, %v458, 0
        %v510 = vsel %vm499, %v459, 0
        %vm512 = vcmask 1043456
        %v514 = vsel %vm512, %v472, 0
        %v517 = vsel %vm512, %v473, 0
        %v520 = vsel %vm512, %v474, 0
        %522 = vmatprep.subr.mxu0 %v461
        %523 = vmatpush1.msra.mxu0 %v460
        %524 = vmatprep.subr.mxu0 %v464
        %525 = vmatpush1.msra.mxu0 %v463
        %526 = vmatprep.subr.mxu0 %v467
        %527 = vmatpush1.msra.mxu0 %v466
        %528 = vmatprep.subr.mxu0 %v470
        %529 = vmatpush1.msra.mxu0 %v469
        %530 = vmatprep.subr.mxu0 %v517
        %531 = vmatpush1.msra.mxu0 %v514
        %532 = vmatprep.subr.mxu0 0.0
        %533 = vmatpush1.msra.mxu0 0.0
        %534 = vmatprep.subr.mxu0 0.0
        %535 = vmatpush1.msra.mxu0 0.0
        %536 = vmatprep.subr.mxu0 0.0
        %537 = vmatpush1.msra.mxu0 0.0
        %538 = vmatprep.subr.mxu0 0.0
        %539 = vmatpush1.msra.mxu0 0.0
        %540 = vmatprep.subr.mxu0 0.0
        %541 = vmatpush1.msra.mxu0 0.0
        %542 = vmatprep.subr.mxu0 0.0
        %543 = vmatpush1.msra.mxu0 0.0
        %544 = vmatprep.subr.mxu0 0.0
        %545 = vmatpush1.msra.mxu0 0.0
        %546 = vmatprep.subr.mxu0 0.0
        %547 = vmatpush1.msra.mxu0 0.0
        %548 = vmatprep.subr.mxu0 0.0
        %549 = vmatpush1.msra.mxu0 0.0
        %550 = vmatprep.subr.mxu0 0.0
        %551 = vmatpush1.msra.mxu0 0.0
        %552 = vmatprep.subr.mxu0 0.0
        %553 = vmatpush1.msra.mxu0 0.0
        %554 = vmatprep.subr.mxu0 0.0
        %555 = vmatpush1.msra.mxu0 0.0
        %556 = vmatprep.subr.mxu0 0.0
        %557 = vmatpush1.msra.mxu0 0.0
        %558 = vmatprep.subr.mxu0 0.0
        %559 = vmatpush1.msra.mxu0 0.0
        %560 = vmatprep.subr.mxu0 0.0
        %561 = vmatpush1.msra.mxu0 0.0
        %562 = vmatprep.subr.mxu0 0.0
        %563 = vmatpush1.msra.mxu0 0.0
        %564 = vmatprep.subr.mxu0 0.0
        %565 = vmatpush1.msra.mxu0 0.0
        %566 = vmatprep.subr.mxu0 0.0
        %567 = vmatpush1.msra.mxu0 0.0
        %568 = vmatprep.subr.mxu0 0.0
        %569 = vmatpush1.msra.mxu0 0.0
        %570 = vmatprep.subr.mxu0 0.0
        %571 = vmatpush1.msra.mxu0 0.0
        %572 = vmatprep.subr.mxu0 0.0
        %573 = vmatpush1.msra.mxu0 0.0
        %574 = vmatprep.subr.mxu0 0.0
        %575 = vmatpush1.msra.mxu0 0.0
        %576 = vmatprep.subr.mxu0 0.0
        %577 = vmatpush1.msra.mxu0 0.0
        %578 = vmatprep.subr.mxu0 0.0
        %579 = vmatpush1.msra.mxu0 0.0
        %580 = vmatprep.subr.mxu0 0.0
        %581 = vmatpush1.msra.mxu0 0.0
        %582 = vmatprep.subr.mxu0 0.0
        %583 = vmatpush1.msra.mxu0 0.0
        %584 = vmatprep.subr.mxu0 0.0
        %585 = vmatpush1.msra.mxu0 0.0
        %586 = vmatprep.mubr.f32.mxu0 0.0
        %587 = vmatmul.mubr.f32.gmra.mrb[0].mxu0 %v501
        %v588 = vpop.f32.mrb[0].mxu0
        %v589 = vadd.f32 %v482, %v588
        %v590 = vpop.f32.mrb[0].mxu0
        %v591 = vadd.f32 %v482, %v590
        %592 = vmatprep.mubr.f32.mxu0 0.0
        %593 = vmatmul.mubr.f32.gmra.mrb[0].mxu0 %v504
        %v594 = vpop.f32.mrb[0].mxu0
        %v595 = vadd.f32 %v487, %v594
        %v596 = vpop.f32.mrb[0].mxu0
        %v597 = vadd.f32 %v487, %v596
        %598 = vmatprep.mubr.f32.mxu0 0.0
        %599 = vmatmul.mubr.f32.gmra.mrb[0].mxu0 %v507
        %v600 = vpop.f32.mrb[0].mxu0
        %v601 = vadd.f32 %v492, %v600
        %v602 = vpop.f32.mrb[0].mxu0
        %v603 = vadd.f32 %v492, %v602
        %604 = vmatprep.mubr.f32.mxu0 0.0
        %605 = vmatmul.mubr.f32.gmra.mrb[0].mxu0 %v510
        %v606 = vpop.f32.mrb[0].mxu0
        %v607 = vadd.f32 %v497, %v606
        %v608 = vpop.f32.mrb[0].mxu0
        %v609 = vadd.f32 %v497, %v608
        %610 = vdwg.mxu0
        %611 = vmatprep.subr.mxu0 0.0
        %612 = vmatpush1.msra.mxu0 %v462
        %613 = vmatprep.subr.mxu0 0.0
        %614 = vmatpush1.msra.mxu0 %v465
        %615 = vmatprep.subr.mxu0 0.0
        %616 = vmatpush1.msra.mxu0 %v468
        %617 = vmatprep.subr.mxu0 0.0
        %618 = vmatpush1.msra.mxu0 %v471
        %619 = vmatprep.subr.mxu0 0.0
        %620 = vmatpush1.msra.mxu0 %v520
        %621 = vmatprep.subr.mxu0 0.0
        %622 = vmatpush1.msra.mxu0 0.0
        %623 = vmatprep.subr.mxu0 0.0
        %624 = vmatpush1.msra.mxu0 0.0
        %625 = vmatprep.subr.mxu0 0.0
        %626 = vmatpush1.msra.mxu0 0.0
        %627 = vmatprep.subr.mxu0 0.0
        %628 = vmatpush1.msra.mxu0 0.0
        %629 = vmatprep.subr.mxu0 0.0
        %630 = vmatpush1.msra.mxu0 0.0
        %631 = vmatprep.subr.mxu0 0.0
        %632 = vmatpush1.msra.mxu0 0.0
        %633 = vmatprep.subr.mxu0 0.0
        %634 = vmatpush1.msra.mxu0 0.0
        %635 = vmatprep.subr.mxu0 0.0
        %636 = vmatpush1.msra.mxu0 0.0
        %637 = vmatprep.subr.mxu0 0.0
        %638 = vmatpush1.msra.mxu0 0.0
        %639 = vmatprep.subr.mxu0 0.0
        %640 = vmatpush1.msra.mxu0 0.0
        %641 = vmatprep.subr.mxu0 0.0
        %642 = vmatpush1.msra.mxu0 0.0
        %643 = vmatprep.subr.mxu0 0.0
        %644 = vmatpush1.msra.mxu0 0.0
        %645 = vmatprep.subr.mxu0 0.0
        %646 = vmatpush1.msra.mxu0 0.0
        %647 = vmatprep.subr.mxu0 0.0
        %648 = vmatpush1.msra.mxu0 0.0
        %649 = vmatprep.subr.mxu0 0.0
        %650 = vmatpush1.msra.mxu0 0.0
        %651 = vmatprep.subr.mxu0 0.0
        %652 = vmatpush1.msra.mxu0 0.0
        %653 = vmatprep.subr.mxu0 0.0
        %654 = vmatpush1.msra.mxu0 0.0
        %655 = vmatprep.subr.mxu0 0.0
        %656 = vmatpush1.msra.mxu0 0.0
        %657 = vmatprep.subr.mxu0 0.0
        %658 = vmatpush1.msra.mxu0 0.0
        %659 = vmatprep.subr.mxu0 0.0
        %660 = vmatpush1.msra.mxu0 0.0
        %661 = vmatprep.subr.mxu0 0.0
        %662 = vmatpush1.msra.mxu0 0.0
        %663 = vmatprep.subr.mxu0 0.0
        %664 = vmatpush1.msra.mxu0 0.0
        %665 = vmatprep.subr.mxu0 0.0
        %666 = vmatpush1.msra.mxu0 0.0
        %667 = vmatprep.subr.mxu0 0.0
        %668 = vmatpush1.msra.mxu0 0.0
        %669 = vmatprep.subr.mxu0 0.0
        %670 = vmatpush1.msra.mxu0 0.0
        %671 = vmatprep.subr.mxu0 0.0
        %672 = vmatpush1.msra.mxu0 0.0
        %673 = vmatprep.subr.mxu0 0.0
        %674 = vmatpush1.msra.mxu0 0.0
        %675 = vmatprep.mubr.f32.mxu0 0.0
        %676 = vmatmul.mubr.f32.gmra.mrb[0].mxu0 %v501
        %v677 = vpop.f32.mrb[0].mxu0
        %v678 = vadd.f32 %v482, %v677
        %v679 = vpop.f32.mrb[0].mxu0
        %680 = vmatprep.mubr.f32.mxu0 0.0
        %681 = vmatmul.mubr.f32.gmra.mrb[0].mxu0 %v504
        %v682 = vpop.f32.mrb[0].mxu0
        %v683 = vadd.f32 %v487, %v682
        %v684 = vpop.f32.mrb[0].mxu0
        %685 = vmatprep.mubr.f32.mxu0 0.0
        %686 = vmatmul.mubr.f32.gmra.mrb[0].mxu0 %v507
        %v687 = vpop.f32.mrb[0].mxu0
        %v688 = vadd.f32 %v492, %v687
        %v689 = vpop.f32.mrb[0].mxu0
        %690 = vmatprep.mubr.f32.mxu0 0.0
        %691 = vmatmul.mubr.f32.gmra.mrb[0].mxu0 %v510
        %v692 = vpop.f32.mrb[0].mxu0
        %v693 = vadd.f32 %v497, %v692
        %v694 = vpop.f32.mrb[0].mxu0
        %695 = vdwg.mxu0
        %v696 = vmax.f32 %v589, 0.0
        %v697 = vmax.f32 %v591, 0.0
        %v698 = vmax.f32 %v678, 0.0
        %v699 = vmax.f32 %v595, 0.0
        %v700 = vmax.f32 %v597, 0.0
        %v701 = vmax.f32 %v683, 0.0
        %v702 = vmax.f32 %v601, 0.0
        %v703 = vmax.f32 %v603, 0.0
        %v704 = vmax.f32 %v688, 0.0
        %v705 = vmax.f32 %v607, 0.0
        %v706 = vmax.f32 %v609, 0.0
        %v707 = vmax.f32 %v693, 0.0
        %v708 = vld [vmem:[%s3] sm:$0x7]
        %v710 = vlaneseq
        %v711 = vshrl.u32 %v710, 7
        %v712 = vsub.s32 0, %v711
        %v713 = vrot.slane %v708, %v712
        %v714 = vlaneseq
        %v715 = vshrl.u32 %v714, 7
        %v716 = vsub.s32 1, %v715
        %v717 = vrot.slane %v708, %v716
        %v718 = vlaneseq
        %v719 = vshrl.u32 %v718, 7
        %v720 = vsub.s32 2, %v719
        %v721 = vrot.slane %v708, %v720
        %vm724 = vcmask 261120
        %v725 = vsel %vm724, %v721, 0
        %v728 = vsel %vm724, %v698, 0
        %v731 = vsel %vm724, %v701, 0
        %v734 = vsel %vm724, %v704, 0
        %v737 = vsel %vm724, %v707, 0
        %739 = vmatprep.subr.mxu0 %v697
        %740 = vmatpush1.xpose.msra.mxu0 %v696
        %741 = vmatprep.subr.mxu0 %v700
        %742 = vmatpush1.xpose.msra.mxu0 %v699
        %743 = vmatprep.subr.mxu0 %v703
        %744 = vmatpush1.xpose.msra.mxu0 %v702
        %745 = vmatprep.subr.mxu0 %v706
        %746 = vmatpush1.xpose.msra.mxu0 %v705
        %747 = vmatprep.subr.mxu0 0.0
        %748 = vmatpush1.xpose.msra.mxu0 0.0
        %749 = vmatprep.subr.mxu0 0.0
        %750 = vmatpush1.xpose.msra.mxu0 0.0
        %751 = vmatprep.subr.mxu0 0.0
        %752 = vmatpush1.xpose.msra.mxu0 0.0
        %753 = vmatprep.subr.mxu0 0.0
        %754 = vmatpush1.xpose.msra.mxu0 0.0
        %755 = vmatprep.subr.mxu0 0.0
        %756 = vmatpush1.xpose.msra.mxu0 0.0
        %757 = vmatprep.subr.mxu0 0.0
        %758 = vmatpush1.xpose.msra.mxu0 0.0
        %759 = vmatprep.subr.mxu0 0.0
        %760 = vmatpush1.xpose.msra.mxu0 0.0
        %761 = vmatprep.subr.mxu0 0.0
        %762 = vmatpush1.xpose.msra.mxu0 0.0
        %763 = vmatprep.subr.mxu0 0.0
        %764 = vmatpush1.xpose.msra.mxu0 0.0
        %765 = vmatprep.subr.mxu0 0.0
        %766 = vmatpush1.xpose.msra.mxu0 0.0
        %767 = vmatprep.subr.mxu0 0.0
        %768 = vmatpush1.xpose.msra.mxu0 0.0
        %769 = vmatprep.subr.mxu0 0.0
        %770 = vmatpush1.xpose.msra.mxu0 0.0
        %771 = vmatprep.subr.mxu0 0.0
        %772 = vmatpush1.xpose.msra.mxu0 0.0
        %773 = vmatprep.subr.mxu0 0.0
        %774 = vmatpush1.xpose.msra.mxu0 0.0
        %775 = vmatprep.subr.mxu0 0.0
        %776 = vmatpush1.xpose.msra.mxu0 0.0
        %777 = vmatprep.subr.mxu0 0.0
        %778 = vmatpush1.xpose.msra.mxu0 0.0
        %779 = vmatprep.subr.mxu0 0.0
        %780 = vmatpush1.xpose.msra.mxu0 0.0
        %781 = vmatprep.subr.mxu0 0.0
        %782 = vmatpush1.xpose.msra.mxu0 0.0
        %783 = vmatprep.subr.mxu0 0.0
        %784 = vmatpush1.xpose.msra.mxu0 0.0
        %785 = vmatprep.subr.mxu0 0.0
        %786 = vmatpush1.xpose.msra.mxu0 0.0
        %787 = vmatprep.subr.mxu0 0.0
        %788 = vmatpush1.xpose.msra.mxu0 0.0
        %789 = vmatprep.subr.mxu0 0.0
        %790 = vmatpush1.xpose.msra.mxu0 0.0
        %791 = vmatprep.subr.mxu0 0.0
        %792 = vmatpush1.xpose.msra.mxu0 0.0
        %793 = vmatprep.subr.mxu0 0.0
        %794 = vmatpush1.xpose.msra.mxu0 0.0
        %795 = vmatprep.subr.mxu0 0.0
        %796 = vmatpush1.xpose.msra.mxu0 0.0
        %797 = vmatprep.subr.mxu0 0.0
        %798 = vmatpush1.xpose.msra.mxu0 0.0
        %799 = vmatprep.subr.mxu0 0.0
        %800 = vmatpush1.xpose.msra.mxu0 0.0
        %801 = vmatprep.subr.mxu0 0.0
        %802 = vmatpush1.xpose.msra.mxu0 0.0
        %803 = vmatprep.mubr.f32.mxu0 %v717
        %804 = vmatmul.mubr.f32.gmra.mrb[0].mxu0 %v713
        %v805 = vpop.f32.mrb[0].mxu0
        %v806 = vadd.f32 0.0, %v805
        %v807 = vpop.f32.mrb[0].mxu0
        %808 = vdwg.mxu0
        %809 = vmatprep.subr.mxu0 0.0
        %810 = vmatpush1.xpose.msra.mxu0 %v728
        %811 = vmatprep.subr.mxu0 0.0
        %812 = vmatpush1.xpose.msra.mxu0 %v731
        %813 = vmatprep.subr.mxu0 0.0
        %814 = vmatpush1.xpose.msra.mxu0 %v734
        %815 = vmatprep.subr.mxu0 0.0
        %816 = vmatpush1.xpose.msra.mxu0 %v737
        %817 = vmatprep.subr.mxu0 0.0
        %818 = vmatpush1.xpose.msra.mxu0 0.0
        %819 = vmatprep.subr.mxu0 0.0
        %820 = vmatpush1.xpose.msra.mxu0 0.0
        %821 = vmatprep.subr.mxu0 0.0
        %822 = vmatpush1.xpose.msra.mxu0 0.0
        %823 = vmatprep.subr.mxu0 0.0
        %824 = vmatpush1.xpose.msra.mxu0 0.0
        %825 = vmatprep.subr.mxu0 0.0
        %826 = vmatpush1.xpose.msra.mxu0 0.0
        %827 = vmatprep.subr.mxu0 0.0
        %828 = vmatpush1.xpose.msra.mxu0 0.0
        %829 = vmatprep.subr.mxu0 0.0
        %830 = vmatpush1.xpose.msra.mxu0 0.0
        %831 = vmatprep.subr.mxu0 0.0
        %832 = vmatpush1.xpose.msra.mxu0 0.0
        %833 = vmatprep.subr.mxu0 0.0
        %834 = vmatpush1.xpose.msra.mxu0 0.0
        %835 = vmatprep.subr.mxu0 0.0
        %836 = vmatpush1.xpose.msra.mxu0 0.0
        %837 = vmatprep.subr.mxu0 0.0
        %838 = vmatpush1.xpose.msra.mxu0 0.0
        %839 = vmatprep.subr.mxu0 0.0
        %840 = vmatpush1.xpose.msra.mxu0 0.0
        %841 = vmatprep.subr.mxu0 0.0
        %842 = vmatpush1.xpose.msra.mxu0 0.0
        %843 = vmatprep.subr.mxu0 0.0
        %844 = vmatpush1.xpose.msra.mxu0 0.0
        %845 = vmatprep.subr.mxu0 0.0
        %846 = vmatpush1.xpose.msra.mxu0 0.0
        %847 = vmatprep.subr.mxu0 0.0
        %848 = vmatpush1.xpose.msra.mxu0 0.0
        %849 = vmatprep.subr.mxu0 0.0
        %850 = vmatpush1.xpose.msra.mxu0 0.0
        %851 = vmatprep.subr.mxu0 0.0
        %852 = vmatpush1.xpose.msra.mxu0 0.0
        %853 = vmatprep.subr.mxu0 0.0
        %854 = vmatpush1.xpose.msra.mxu0 0.0
        %855 = vmatprep.subr.mxu0 0.0
        %856 = vmatpush1.xpose.msra.mxu0 0.0
        %857 = vmatprep.subr.mxu0 0.0
        %858 = vmatpush1.xpose.msra.mxu0 0.0
        %859 = vmatprep.subr.mxu0 0.0
        %860 = vmatpush1.xpose.msra.mxu0 0.0
        %861 = vmatprep.subr.mxu0 0.0
        %862 = vmatpush1.xpose.msra.mxu0 0.0
        %863 = vmatprep.subr.mxu0 0.0
        %864 = vmatpush1.xpose.msra.mxu0 0.0
        %865 = vmatprep.subr.mxu0 0.0
        %866 = vmatpush1.xpose.msra.mxu0 0.0
        %867 = vmatprep.subr.mxu0 0.0
        %868 = vmatpush1.xpose.msra.mxu0 0.0
        %869 = vmatprep.subr.mxu0 0.0
        %870 = vmatpush1.xpose.msra.mxu0 0.0
        %871 = vmatprep.subr.mxu0 0.0
        %872 = vmatpush1.xpose.msra.mxu0 0.0
        %873 = vmatprep.mubr.f32.mxu0 0.0
        %874 = vmatmul.mubr.f32.gmra.mrb[0].mxu0 %v725
        %v875 = vpop.f32.mrb[0].mxu0
        %v876 = vadd.f32 %v806, %v875
        %v877 = vpop.f32.mrb[0].mxu0
        %878 = vdwg.mxu0
        %v879 = vld [vmem:[#allocation6] sm:$0xff]
        %v880 = vld [vmem:[#allocation6 + $0x8] sm:$0xff]
        %v881 = vld [vmem:[#allocation6 + $0x10] sm:$0xff]
        %v882 = vld [vmem:[#allocation6 + $0x18] sm:$0xff]
        %v883 = vld [vmem:[%s5] sm:$0x1]
        %v885 = vsel %vm724, %v876, 0
        %887 = vmatprep.subr.mxu0 0.0
        %888 = vmatpush1.msra.mxu0 %v879
        %889 = vmatprep.subr.mxu0 0.0
        %890 = vmatpush1.msra.mxu0 %v880
        %891 = vmatprep.subr.mxu0 0.0
        %892 = vmatpush1.msra.mxu0 %v881
        %893 = vmatprep.subr.mxu0 0.0
        %894 = vmatpush1.msra.mxu0 %v882
        %895 = vmatprep.subr.mxu0 0.0
        %896 = vmatpush1.msra.mxu0 0.0
        %897 = vmatprep.subr.mxu0 0.0
        %898 = vmatpush1.msra.mxu0 0.0
        %899 = vmatprep.subr.mxu0 0.0
        %900 = vmatpush1.msra.mxu0 0.0
        %901 = vmatprep.subr.mxu0 0.0
        %902 = vmatpush1.msra.mxu0 0.0
        %903 = vmatprep.subr.mxu0 0.0
        %904 = vmatpush1.msra.mxu0 0.0
        %905 = vmatprep.subr.mxu0 0.0
        %906 = vmatpush1.msra.mxu0 0.0
        %907 = vmatprep.subr.mxu0 0.0
        %908 = vmatpush1.msra.mxu0 0.0
        %909 = vmatprep.subr.mxu0 0.0
        %910 = vmatpush1.msra.mxu0 0.0
        %911 = vmatprep.subr.mxu0 0.0
        %912 = vmatpush1.msra.mxu0 0.0
        %913 = vmatprep.subr.mxu0 0.0
        %914 = vmatpush1.msra.mxu0 0.0
        %915 = vmatprep.subr.mxu0 0.0
        %916 = vmatpush1.msra.mxu0 0.0
        %917 = vmatprep.subr.mxu0 0.0
        %918 = vmatpush1.msra.mxu0 0.0
        %919 = vmatprep.subr.mxu0 0.0
        %920 = vmatpush1.msra.mxu0 0.0
        %921 = vmatprep.subr.mxu0 0.0
        %922 = vmatpush1.msra.mxu0 0.0
        %923 = vmatprep.subr.mxu0 0.0
        %924 = vmatpush1.msra.mxu0 0.0
        %925 = vmatprep.subr.mxu0 0.0
        %926 = vmatpush1.msra.mxu0 0.0
        %927 = vmatprep.subr.mxu0 0.0
        %928 = vmatpush1.msra.mxu0 0.0
        %929 = vmatprep.subr.mxu0 0.0
        %930 = vmatpush1.msra.mxu0 0.0
        %931 = vmatprep.subr.mxu0 0.0
        %932 = vmatpush1.msra.mxu0 0.0
        %933 = vmatprep.subr.mxu0 0.0
        %934 = vmatpush1.msra.mxu0 0.0
        %935 = vmatprep.subr.mxu0 0.0
        %936 = vmatpush1.msra.mxu0 0.0
        %937 = vmatprep.subr.mxu0 0.0
        %938 = vmatpush1.msra.mxu0 0.0
        %939 = vmatprep.subr.mxu0 0.0
        %940 = vmatpush1.msra.mxu0 0.0
        %941 = vmatprep.subr.mxu0 0.0
        %942 = vmatpush1.msra.mxu0 0.0
        %943 = vmatprep.subr.mxu0 0.0
        %944 = vmatpush1.msra.mxu0 0.0
        %945 = vmatprep.subr.mxu0 0.0
        %946 = vmatpush1.msra.mxu0 0.0
        %947 = vmatprep.subr.mxu0 0.0
        %948 = vmatpush1.msra.mxu0 0.0
        %949 = vmatprep.subr.mxu0 0.0
        %950 = vmatpush1.msra.mxu0 0.0
        %951 = vmatprep.mubr.f32.mxu0 0.0
        %952 = vmatmul.mubr.f32.gmra.mrb[0].mxu0 %v885
        %v953 = vpop.f32.mrb[0].mxu0
        %v954 = vadd.f32 %v883, %v953
        %v955 = vpop.f32.mrb[0].mxu0
        %956 = vdwg.mxu0
        %957 = vst [vmem:[%s281] sm:$0x1] %v954
        %s958 = sand.u32 %s163, 1
        %s959 = scalar_lea.sflag [#allocation5], %s958
        %s960 = sand.u32 %s163, 1
        %s961 = scalar_lea.vmem [#allocation8], %s960
        // Predicated region
        $region53: #{tpu_custom_call.1} parent=43 // pred_check
          %p962 = pneg %p173
        $region54: #{tpu_custom_call.1} parent=43 // pred_check_branch
          %964 = sbr.rel (%p962) target = $region56
        $region55: #{tpu_custom_call.1} parent=43 // pred_region
          %s966 = ssub.s32 16, 16
          %967 = vsyncadd %s959, %s966
          %s968 = smul.addr %s24, 16
          %s969 = scalar_lea.hbm %s6, %s968
          %s971 = sshll.u32 %s961, 4
          %s972 = int_to_ptr.vmem [resolvable:$true] %s971
          %974 = dma.vmem_to_hbm [thread:$0]  %s972, 16, %s969, %s959
        $region56: #{tpu_custom_call.1} parent=43 // pred_fallthru
          _
      $region44: #{tpu_custom_call.1} parent=5 // pred_fallthru
        _
      %p975 = scmp.le.s32.totalorder 2, %s19
      // Predicated region
      $region57: #{tpu_custom_call.1} parent=5 // pred_check
        %p976 = pneg %p975
      $region58: #{tpu_custom_call.1} parent=5 // pred_check_branch
        %978 = sbr.rel (%p976) target = $region60
      $region59: #{tpu_custom_call.1} parent=5 // pred_region
        %s979 = ssub.s32 %s19, 2
        // Predicated region
        $region61: #{tpu_custom_call.1} parent=59 // pred_check
          %p980 = pneg %p179
        $region62: #{tpu_custom_call.1} parent=59 // pred_check_branch
          %982 = sbr.rel (%p980) target = $region64
        $region63: #{tpu_custom_call.1} parent=59 // pred_region
          %s983 = sand.u32 %s164, 1
          %s984 = scalar_lea.sflag [#allocation5], %s983
          %s985 = sand.u32 %s164, 1
          %s986 = scalar_lea.vmem [#allocation8], %s985
          %987 = dma.done %s984, 16
        $region64: #{tpu_custom_call.1} parent=59 // pred_fallthru
          _
      $region60: #{tpu_custom_call.1} parent=5 // pred_fallthru
        _
    $region6: #{tpu_custom_call.1} parent=1 // loop_footer
      %s23 = sadd.s32 1, %s19
    $region7: #{tpu_custom_call.1} parent=1 // loop_footer_branch
      %18 = sbr.rel target = $region3
    $region8: #{tpu_custom_call.1} parent=1 // loop_exit
      _
    %988 = vsyncpa [#allocation4], 1
    %s989 = scalar_lea.sflag [#allocation4], 1
    %990 = vsyncpa %s989, 1
    %991 = vsyncpa [#allocation7], 1
    %992 = vsyncpa [#allocation5], 1
    %s993 = scalar_lea.sflag [#allocation5], 1
    %994 = vsyncpa %s993, 1

</llo_original>
